<compile_context>
chip_gen: v6e
topology: v6e:2x2x1
jax: 0.10.0
libtpu: 0.0.40
codegen_flags: <defaults>
</compile_context>

<pallas_src>
import functools

import jax
import jax.numpy as jnp
from jax.experimental import pallas as pl
from jax.experimental.pallas import tpu as pltpu

_LANE = 128


def _round_up(x, m):
    return ((x + m - 1) // m) * m


def _tpu_vmem_capacity():
    """Per-core VMEM capacity in bytes; conservative (v7x) fallback."""
    try:
        info = pltpu.get_tpu_info()
        cap = getattr(info, "vmem_capacity_bytes", None)
        if cap:
            return int(cap)
    except Exception:  # not on TPU / API unavailable -> be conservative
        pass
    return 64 * 1024 * 1024


def _choose_seq_tile(S, C, D_lane, in_bpe, out_bpe, compute_bpe, w_bytes,
                     tile_budget, max_ts):
    """Largest lane-aligned S tile whose full working set fits the budget.

    Per-S-element VMEM bytes (everything that scales with TS):
      2x double-buffered input tile : 2 * C * in_bpe
      2x double-buffered output tile: 2 * D_lane * out_bpe
      in-kernel compute-dtype x copy:     C * compute_bpe
      f32 matmul accumulator        :     D_lane * 4
      out-dtype cast before store   :     D_lane * out_bpe
    """
    per_elem = (2 * C * in_bpe
                + 2 * D_lane * out_bpe
                + C * compute_bpe
                + D_lane * (4 + out_bpe))
    avail = max(tile_budget - w_bytes, per_elem * _LANE)
    ts = min((avail // per_elem) // _LANE * _LANE, max_ts)
    ts = max(ts, _LANE)
    if ts >= S:
        return S            # single full-extent tile (legal for any S)
    return ts               # 128-multiple partial tiles; ragged edge via cdiv


def _mask_mlp_kernel(x_ref, w_ref, b_ref, o_ref, *, compute_dtype):
    # x_ref: (1, C, TS)  activation tile, native NCHW-flattened layout
    # w_ref: (C, D)      weight in compute_dtype, VMEM-resident across grid
    # b_ref: (1, D)      bias (f32)
    # o_ref: (1, TS, D)  output tile
    x = x_ref[0].astype(compute_dtype)                 # (C, TS)
    w = w_ref[...]                                     # (C, D)
    # Contract over C (x dim 0 vs w dim 0): trans-LHS matmul on the MXU.
    # TODO(synk): confirm via pl.lower_as_mlir that this does not lower to a
    # full-tile XLU transpose on the target generation (expected hidden under
    # the DMA for this HBM-bound kernel anyway).
    acc = jax.lax.dot_general(
        x, w,
        dimension_numbers=(((0,), (0,)), ((), ())),
        preferred_element_type=jnp.float32,
    )                                                  # (TS, D), f32 acc
    o_ref[0] = (acc + b_ref[...]).astype(o_ref.dtype)


def segformer_mask_mlp(hidden_states, weight, bias, *,
                       compute_dtype=jnp.bfloat16, out_dtype=None):
    """hidden_states: (B, C, H, W); weight: (D, C) (torch nn.Linear layout);
    bias: (D,).  Returns (B, H*W, D).

    out_dtype defaults to hidden_states.dtype (PyTorch parity); pass
    jnp.bfloat16 when the consumer accepts it to halve output HBM traffic.
    """
    B, C, H, W = hidden_states.shape
    D = weight.shape[0]
    S = H * W
    if out_dtype is None:
        out_dtype = hidden_states.dtype

    # flatten(2): pure reshape (no data movement).  The (1, 2) transpose is
    # fused into the kernel's contraction, not done in XLA.
    x = hidden_states.reshape(B, C, S)
    w = weight.T.astype(compute_dtype)                 # (C, D)
    b = bias.astype(jnp.float32).reshape(1, D)

    D_lane = _round_up(D, _LANE)                       # vreg-layout width of D
    in_bpe = x.dtype.itemsize
    out_bpe = jnp.dtype(out_dtype).itemsize
    compute_bpe = jnp.dtype(compute_dtype).itemsize
    # Weight + bias, conservatively counted double-buffered.
    w_bytes = 2 * (C * D_lane * compute_bpe + D_lane * 4)

    # Generation-aware VMEM budget.
    cap = _tpu_vmem_capacity()
    if cap >= 96 * 1024 * 1024:
        # v5e / v6e: 128 MiB physical VMEM -> big tiles, explicit high limit
        # (v5e's scoped default is only 16 MiB, so the limit is doing work).
        tile_budget = 64 * 1024 * 1024
        vmem_limit = 96 * 1024 * 1024
        max_ts = 8192
        small_vmem = False
    else:
        # v7x: 64 MiB physical per TC -> conservative budget.
        tile_budget = 40 * 1024 * 1024
        vmem_limit = 48 * 1024 * 1024
        max_ts = 4096
        small_vmem = True

    TS = _choose_seq_tile(S, C, D_lane, in_bpe, out_bpe, compute_bpe,
                          w_bytes, tile_budget, max_ts)

    # v7x megacore: make sure both TensorCores get at least one tile.
    if small_vmem and B * pl.cdiv(S, TS) < 2 and S > _LANE:
        TS = max(_LANE, _round_up(pl.cdiv(S, 2), _LANE))

    grid = (B, pl.cdiv(S, TS))

    cost = pl.CostEstimate(
        flops=2 * B * S * C * D,
        transcendentals=0,
        bytes_accessed=(B * C * S * in_bpe
                        + C * D * compute_bpe + D * 4
                        + B * S * D * out_bpe),
    )

    out = pl.pallas_call(
        functools.partial(_mask_mlp_kernel, compute_dtype=compute_dtype),
        out_shape=jax.ShapeDtypeStruct((B, S, D), out_dtype),
        grid_spec=pltpu.PrefetchScalarGridSpec(
            num_scalar_prefetch=0,
            grid=grid,
            in_specs=[
                pl.BlockSpec((1, C, TS), lambda bb, ss: (bb, 0, ss)),
                pl.BlockSpec((C, D), lambda bb, ss: (0, 0)),
                pl.BlockSpec((1, D), lambda bb, ss: (0, 0)),
            ],
            out_specs=pl.BlockSpec((1, TS, D), lambda bb, ss: (bb, ss, 0)),
        ),
        compiler_params=pltpu.CompilerParams(
            dimension_semantics=("parallel", "parallel"),
            vmem_limit_bytes=vmem_limit,
        ),
        cost_estimate=cost,
    )(x, w, b)

    return out


if __name__ == "__main__":
    # Small shapes consistent with the module: batch=2, input_dim=4 channels,
    # 16x16 spatial -> seq=256, output_dim=32.
    B, C, H, W = 2, 4, 16, 16
    D = 32

    key = jax.random.PRNGKey(0)
    k_x, k_w, k_b = jax.random.split(key, 3)

    hidden_states = jax.random.normal(k_x, (B, C, H, W), dtype=jnp.float32)
    # Deterministic nn.Linear-style init: U(-1/sqrt(C), 1/sqrt(C)).
    bound = 1.0 / (C ** 0.5)
    weight = jax.random.uniform(k_w, (D, C), minval=-bound, maxval=bound,
                                dtype=jnp.float32)
    bias = jax.random.uniform(k_b, (D,), minval=-bound, maxval=bound,
                              dtype=jnp.float32)

    # Reference in plain JAX (matches the PyTorch forward).
    x_nsc = hidden_states.reshape(B, C, H * W).transpose(0, 2, 1)
    ref = x_nsc @ weight.T + bias

    # Default path: bf16 MXU operands, f32 accumulation, f32 output.
    out = jax.block_until_ready(segformer_mask_mlp(hidden_states, weight, bias))
    assert out.shape == (B, H * W, D)
    assert jnp.allclose(out, ref, atol=5e-2, rtol=5e-2)

    # f32 compute path (full-precision parity with the PyTorch module).
    out_f32 = jax.block_until_ready(
        segformer_mask_mlp(hidden_states, weight, bias,
                           compute_dtype=jnp.float32))
    assert out_f32.shape == (B, H * W, D)
    assert jnp.allclose(out_f32, ref, atol=1e-4, rtol=1e-4)

    # bf16 output path (halves output HBM bytes for the HBM-bound kernel).
    out_bf16 = jax.block_until_ready(
        segformer_mask_mlp(hidden_states, weight, bias,
                           out_dtype=jnp.bfloat16))
    assert out_bf16.shape == (B, H * W, D)
    assert out_bf16.dtype == jnp.bfloat16
    assert jnp.allclose(out_bf16.astype(jnp.float32), ref, atol=1e-1, rtol=1e-1)

    print("KERNEL_OK")
</pallas_src>

<mosaic_0001>
module attributes {stable_mosaic.version = 11 : i64} {
  func.func @_mask_mlp_kernel(%arg0: i32, %arg1: i32, %arg2: memref<1x4x256xf32, #tpu.memory_space<vmem>>, %arg3: memref<4x32xbf16, #tpu.memory_space<vmem>>, %arg4: memref<1x32xf32, #tpu.memory_space<vmem>>, %arg5: memref<1x256x32xf32, #tpu.memory_space<vmem>>) attributes {dimension_semantics = [#tpu.dimension_semantics<parallel>, #tpu.dimension_semantics<parallel>], iteration_bounds = array<i64: 2, 1>, scalar_prefetch = 0 : i64, scratch_operands = 0 : i64, tpu.core_type = #tpu.core_type<tc>, window_params = [{transform_indices = @transform_0, window_bounds = array<i64: 1, 4, 256>}, {pipeline_mode = #tpu.pipeline_mode<synchronous>, transform_indices = @transform_1, window_bounds = array<i64: 4, 32>}, {pipeline_mode = #tpu.pipeline_mode<synchronous>, transform_indices = @transform_2, window_bounds = array<i64: 1, 32>}, {transform_indices = @transform_3, window_bounds = array<i64: 1, 256, 32>}]} {
    %c0 = arith.constant 0 : index
    %c0_0 = arith.constant 0 : index
    %c0_1 = arith.constant 0 : index
    %0 = vector.load %arg2[%c0, %c0_0, %c0_1] : memref<1x4x256xf32, #tpu.memory_space<vmem>>, vector<1x4x256xf32>
    %1 = vector.shape_cast %0 : vector<1x4x256xf32> to vector<4x256xf32>
    %2 = arith.truncf %1 : vector<4x256xf32> to vector<4x256xbf16>
    %c0_2 = arith.constant 0 : index
    %c0_3 = arith.constant 0 : index
    %3 = vector.load %arg3[%c0_2, %c0_3] : memref<4x32xbf16, #tpu.memory_space<vmem>>, vector<4x32xbf16>
    %cst = arith.constant dense<0.000000e+00> : vector<256x32xf32>
    %4 = tpu.matmul %2, %3, %cst {dimension_numbers = #tpu.dot_dimension_numbers<[0], [0], [1], [1], [0, 1, 1, 1], [], []>} : vector<4x256xbf16>, vector<4x32xbf16>, vector<256x32xf32> -> vector<256x32xf32>
    %c0_4 = arith.constant 0 : index
    %c0_5 = arith.constant 0 : index
    %5 = vector.load %arg4[%c0_4, %c0_5] : memref<1x32xf32, #tpu.memory_space<vmem>>, vector<1x32xf32>
    %6 = vector.broadcast %5 : vector<1x32xf32> to vector<256x32xf32>
    %7 = arith.addf %4, %6 : vector<256x32xf32>
    %c0_6 = arith.constant 0 : index
    %c0_7 = arith.constant 0 : index
    %c0_8 = arith.constant 0 : index
    %8 = vector.load %arg5[%c0_6, %c0_7, %c0_8] : memref<1x256x32xf32, #tpu.memory_space<vmem>>, vector<1x256x32xf32>
    %9 = vector.shape_cast %8 : vector<1x256x32xf32> to vector<256x32xf32>
    %10 = vector.shape_cast %7 : vector<256x32xf32> to vector<1x256x32xf32>
    tpu.vector_store %arg5[%c0_6, %c0_7, %c0_8], %10 {strides = array<i32>} : memref<1x256x32xf32, #tpu.memory_space<vmem>>, vector<1x256x32xf32>,
    return
  }
  func.func @transform_0(%arg0: i32, %arg1: i32) -> (i32, i32, i32) {
    %c0_i32 = arith.constant 0 : i32
    %c0_i32_0 = arith.constant 0 : i32
    return %arg0, %c0_i32, %arg1 : i32, i32, i32
  }
  func.func @transform_1(%arg0: i32, %arg1: i32) -> (i32, i32) {
    %c0_i32 = arith.constant 0 : i32
    %c0_i32_0 = arith.constant 0 : i32
    %c0_i32_1 = arith.constant 0 : i32
    return %c0_i32, %c0_i32_0 : i32, i32
  }
  func.func @transform_2(%arg0: i32, %arg1: i32) -> (i32, i32) {
    %c0_i32 = arith.constant 0 : i32
    %c0_i32_0 = arith.constant 0 : i32
    %c0_i32_1 = arith.constant 0 : i32
    return %c0_i32, %c0_i32_0 : i32, i32
  }
  func.func @transform_3(%arg0: i32, %arg1: i32) -> (i32, i32, i32) {
    %c0_i32 = arith.constant 0 : i32
    %c0_i32_0 = arith.constant 0 : i32
    return %arg0, %arg1, %c0_i32 : i32, i32, i32
  }
}

</mosaic_0001>

<llo_original>
// kernel: tpu_custom_call.1
$region0: #{tpu_custom_call.1}
  #allocation0 [shape = 'u32[]', space=smem, size = 0x4, offset = 0x4, fixed_abs, tag = 'smem constant byte address 0x4 - core index']
  #allocation1 [shape = 'u32[144,128]{1,0:T(1,128)}', space=vmem, size = 0x12000, scoped, tag = 'internal scratch']
  %s0 = inlined_call_operand.hbm [shape: f32[2,4,256], index: 0, kind: input, shape index: {}]
  %s1 = inlined_call_operand.hbm [shape: bf16[4,32], index: 1, kind: input, shape index: {}]
  %s2 = inlined_call_operand.vmem [shape: f32[1,32], index: 2, kind: input, shape index: {}]
  %s3 = inlined_call_operand.vmem [shape: f32[2,256,32], index: 3, kind: output, shape index: {}]
  %s4 = sld [smem:[#allocation0]]
  $region53: #{tpu_custom_call.1} parent=0
    _
  %s6 = ssub.s32 1, %s4
  %s7 = scalar_select 0, %s6, %s4
  $region1: #{tpu_custom_call.1} parent=0
    #allocation2 [shape = 'u8[8192]{0}', space=vmem, size = 0x2000, scoped, tag = 'input window, operand 0']
    #allocation3 [shape = 's32[2]{0}', space=sflag, size = 0x8, scoped, tag = 'scoped memory for tpu_custom_call.1']
    #allocation4 [shape = 'u8[1024]{0}', space=vmem, size = 0x400, scoped, tag = 'input window, operand 1, single buffered']
    #allocation5 [shape = 's32[1]{0}', space=sflag, size = 0x4, scoped, tag = 'scoped memory for tpu_custom_call.1']
    %8 = vsyncpa [#allocation3], 0
    %s9 = scalar_lea.sflag [#allocation3], 1
    %10 = vsyncpa %s9, 0
    %11 = vsyncpa [#allocation5], 0
    loop: start=0, step=1, limit=4
    $region2: #{tpu_custom_call.1} parent=1 // loop_pre_header
      _
    $region3: #{tpu_custom_call.1} parent=1 // loop_header
      %s13 = sphi 0, %s17
      %p14 = scmp.ge.s32.totalorder %s13, 4
      %s20 = sphi 0, %s32
      %s21 = sphi 0, %s28
      %s22 = sphi 0, %s20
      %s23 = sphi 0, %s21
      %s24 = sphi 0, %s22
      %s25 = sphi 0, %s23
      %s37 = sphi 0, %s39
      %s40 = sphi 0, %s37
      %s41 = sphi 0, %s40
      %s57 = sphi 0, %s41
      %s61 = sphi 0, %s61
      %s63 = sphi 0, %s61
      %s64 = sphi 0, %s63
      %s78 = sphi 0, %s64
      %s82 = sphi 0, %s82
      %s84 = sphi 0, %s82
      %s85 = sphi 0, %s84
      %s99 = sphi 0, %s85
      %s107 = sphi 0, %s109
      %s110 = sphi 0, %s107
      %s111 = sphi 0, %s110
      %s127 = sphi 0, %s111
    $region4: #{tpu_custom_call.1} parent=1 // loop_header_branch
      %16 = sbr.rel (%p14) target = $region8
    $region5: #{tpu_custom_call.1} parent=1 // loop_body
      %s18 = ssub.s32 %s13, 1
      %s19 = ssub.s32 %s13, 2
      %s26 = sadd.s32 1, %s21
      %p27 = scmp.ge.s32.totalorder %s26, 1
      %s28 = scalar_select %p27, 0, %s26
      %s29 = sadd.s32 1, %s20
      %s30 = scalar_select %p27, %s29, %s20
      %p31 = scmp.ge.s32.totalorder %s30, 2
      %s32 = scalar_select %p31, 0, %s30
      %s33 = ssub.s32 %s20, %s32
      %s34 = ssub.s32 %s21, %s28
      %s35 = sor.u32 %s33, %s34
      %p36 = scmp.eq.s32.totalorder %s35, 0
      %s38 = sadd.s32 %s37, 1
      %s39 = scalar_select %p36, %s37, %s38
      %p42 = pneg %p36
      %p43 = scmp.eq.s32.totalorder %s13, 1
      %p44 = por %p42, %p43
      %p45 = scmp.ne.s32.totalorder %s37, %s40
      %p46 = scmp.eq.s32.totalorder %s13, 0
      %p47 = por %p45, %p46
      %p48 = scmp.ne.s32.totalorder %s37, %s40
      %p49 = scmp.eq.s32.totalorder %s18, 1
      %p50 = por %p48, %p49
      %p51 = scmp.ne.s32.totalorder %s40, %s41
      %p52 = scmp.eq.s32.totalorder %s18, 0
      %p53 = por %p51, %p52
      %p54 = scmp.ne.s32.totalorder %s40, %s41
      %p55 = scmp.eq.s32.totalorder %s19, 1
      %p56 = por %p54, %p55
      %p58 = scmp.ne.s32.totalorder %s41, %s57
      %p59 = scmp.eq.s32.totalorder %s19, 0
      %p60 = por %p58, %p59
      %s62 = sadd.s32 %s61, 1
      %p65 = scmp.eq.s32.totalorder %s13, 1
      %p66 = scmp.ne.s32.totalorder %s61, %s63
      %p67 = scmp.eq.s32.totalorder %s13, 0
      %p68 = por %p66, %p67
      %p69 = scmp.ne.s32.totalorder %s61, %s63
      %p70 = scmp.eq.s32.totalorder %s18, 1
      %p71 = por %p69, %p70
      %p72 = scmp.ne.s32.totalorder %s63, %s64
      %p73 = scmp.eq.s32.totalorder %s18, 0
      %p74 = por %p72, %p73
      %p75 = scmp.ne.s32.totalorder %s63, %s64
      %p76 = scmp.eq.s32.totalorder %s19, 1
      %p77 = por %p75, %p76
      %p79 = scmp.ne.s32.totalorder %s64, %s78
      %p80 = scmp.eq.s32.totalorder %s19, 0
      %p81 = por %p79, %p80
      %s83 = sadd.s32 %s82, 1
      %p86 = scmp.eq.s32.totalorder %s13, 1
      %p87 = scmp.ne.s32.totalorder %s82, %s84
      %p88 = scmp.eq.s32.totalorder %s13, 0
      %p89 = por %p87, %p88
      %p90 = scmp.ne.s32.totalorder %s82, %s84
      %p91 = scmp.eq.s32.totalorder %s18, 1
      %p92 = por %p90, %p91
      %p93 = scmp.ne.s32.totalorder %s84, %s85
      %p94 = scmp.eq.s32.totalorder %s18, 0
      %p95 = por %p93, %p94
      %p96 = scmp.ne.s32.totalorder %s84, %s85
      %p97 = scmp.eq.s32.totalorder %s19, 1
      %p98 = por %p96, %p97
      %p100 = scmp.ne.s32.totalorder %s85, %s99
      %p101 = scmp.eq.s32.totalorder %s19, 0
      %p102 = por %p100, %p101
      %s103 = ssub.s32 %s20, %s32
      %s104 = ssub.s32 %s21, %s28
      %s105 = sor.u32 %s103, %s104
      %p106 = scmp.eq.s32.totalorder %s105, 0
      %s108 = sadd.s32 %s107, 1
      %s109 = scalar_select %p106, %s107, %s108
      %p112 = pneg %p106
      %p113 = scmp.eq.s32.totalorder %s13, 1
      %p114 = por %p112, %p113
      %p115 = scmp.ne.s32.totalorder %s107, %s110
      %p116 = scmp.eq.s32.totalorder %s13, 0
      %p117 = por %p115, %p116
      %p118 = scmp.ne.s32.totalorder %s107, %s110
      %p119 = scmp.eq.s32.totalorder %s18, 1
      %p120 = por %p118, %p119
      %p121 = scmp.ne.s32.totalorder %s110, %s111
      %p122 = scmp.eq.s32.totalorder %s18, 0
      %p123 = por %p121, %p122
      %p124 = scmp.ne.s32.totalorder %s110, %s111
      %p125 = scmp.eq.s32.totalorder %s19, 1
      %p126 = por %p124, %p125
      %p128 = scmp.ne.s32.totalorder %s111, %s127
      %p129 = scmp.eq.s32.totalorder %s19, 0
      %p130 = por %p128, %p129
      %p131 = scmp.le.s32.totalorder 1, %s13
      %p132 = scmp.lt.s32.totalorder %s13, 3
      %p133 = pnand %p131, %p132
      %p134 = pneg %p133
      // Predicated region
      $region9: #{tpu_custom_call.1} parent=5 // pred_check
        _
      $region10: #{tpu_custom_call.1} parent=5 // pred_check_branch
        %136 = sbr.rel (%p133) target = $region12
      $region11: #{tpu_custom_call.1} parent=5 // pred_region
        %s137 = ssub.s32 %s13, 1
        // Predicated region
        $region13: #{tpu_custom_call.1} parent=11 // pred_check
          %p138 = pneg %p74
        $region14: #{tpu_custom_call.1} parent=11 // pred_check_branch
          %140 = sbr.rel (%p138) target = $region16
        $region15: #{tpu_custom_call.1} parent=11 // pred_region
          %s142 = ssub.s32 32, 32
          %143 = vsyncadd [#allocation5], %s142
          %s145 = sshll.u32 [#allocation4], 4
          %s146 = int_to_ptr.vmem [resolvable:$true] %s145
          %148 = dma.hbm_to_vmem [thread:$0]  %s1, 32, %s146, [#allocation5]
        $region16: #{tpu_custom_call.1} parent=11 // pred_fallthru
          _
        // Predicated region
        $region17: #{tpu_custom_call.1} parent=11 // pred_check
          %p149 = pneg %p95
        $region18: #{tpu_custom_call.1} parent=11 // pred_check_branch
          %151 = sbr.rel (%p149) target = $region20
        $region19: #{tpu_custom_call.1} parent=11 // pred_region
          _
        $region20: #{tpu_custom_call.1} parent=11 // pred_fallthru
          _
      $region12: #{tpu_custom_call.1} parent=5 // pred_fallthru
        _
      %p152 = scmp.lt.s32.totalorder %s13, 2
      // Predicated region
      $region21: #{tpu_custom_call.1} parent=5 // pred_check
        %p153 = pneg %p152
      $region22: #{tpu_custom_call.1} parent=5 // pred_check_branch
        %155 = sbr.rel (%p153) target = $region24
      $region23: #{tpu_custom_call.1} parent=5 // pred_region
        // Predicated region
        $region25: #{tpu_custom_call.1} parent=23 // pred_check
          %p156 = pneg %p47
        $region26: #{tpu_custom_call.1} parent=23 // pred_check_branch
          %158 = sbr.rel (%p156) target = $region28
        $region27: #{tpu_custom_call.1} parent=23 // pred_region
          %s159 = sand.u32 %s37, 1
          %s160 = scalar_lea.sflag [#allocation3], %s159
          %s161 = sand.u32 %s37, 1
          %s162 = smul.addr %s161, 8
          %s163 = scalar_lea.vmem [#allocation2], %s162
          %s164 = smul.u32 2, %s21
          %s166 = ssub.s32 128, 128
          %167 = vsyncadd %s160, %s166
          %s168 = smul.addr %s20, 2
          %s169 = sadd.s32 %s164, %s168
          %s170 = smul.addr %s169, 64
          %s171 = scalar_lea.hbm %s0, %s170
          %s173 = sshll.u32 %s163, 4
          %s174 = int_to_ptr.vmem [resolvable:$true] %s173
          %176 = dma.hbm_to_vmem [thread:$0]  %s171, 128, %s174, %s160
        $region28: #{tpu_custom_call.1} parent=23 // pred_fallthru
          _
      $region24: #{tpu_custom_call.1} parent=5 // pred_fallthru
        _
      %p177 = scmp.le.s32.totalorder 1, %s13
      %p178 = scmp.lt.s32.totalorder %s13, 3
      %p179 = pnand %p177, %p178
      %p180 = pneg %p179
      // Predicated region
      $region29: #{tpu_custom_call.1} parent=5 // pred_check
        _
      $region30: #{tpu_custom_call.1} parent=5 // pred_check_branch
        %182 = sbr.rel (%p179) target = $region32
      $region31: #{tpu_custom_call.1} parent=5 // pred_region
        %s183 = ssub.s32 %s13, 1
        %s184 = sand.u32 %s40, 1
        %s185 = scalar_lea.sflag [#allocation3], %s184
        %s186 = sand.u32 %s40, 1
        %s187 = smul.addr %s186, 8
        %s188 = scalar_lea.vmem [#allocation2], %s187
        // Predicated region
        $region33: #{tpu_custom_call.1} parent=31 // pred_check
          %p189 = pneg %p53
        $region34: #{tpu_custom_call.1} parent=31 // pred_check_branch
          %191 = sbr.rel (%p189) target = $region36
        $region35: #{tpu_custom_call.1} parent=31 // pred_region
          %192 = dma.done %s185, 128
        $region36: #{tpu_custom_call.1} parent=31 // pred_fallthru
          _
        // Predicated region
        $region37: #{tpu_custom_call.1} parent=31 // pred_check
          %p193 = pneg %p74
        $region38: #{tpu_custom_call.1} parent=31 // pred_check_branch
          %195 = sbr.rel (%p193) target = $region40
        $region39: #{tpu_custom_call.1} parent=31 // pred_region
          %196 = dma.done [#allocation5], 32
        $region40: #{tpu_custom_call.1} parent=31 // pred_fallthru
          _
        %s197 = sand.u32 %s40, 1
        %s198 = scalar_lea.sflag [#allocation3], %s197
        %s199 = sand.u32 %s40, 1
        %s200 = smul.addr %s199, 8
        %s201 = scalar_lea.vmem [#allocation2], %s200
        %p202 = pneg %p53
        %p203 = pneg %p50
        %p204 = pneg %p74
        %p205 = pneg %p71
        %p206 = pneg %p95
        %p207 = pneg %p92
        %p208 = pneg %p123
        %p209 = pneg %p120
        %s210 = smul.u32 32, %s23
        %p211 = scmp.lt.s32.totalorder %s22, 1
        %s212 = scalar_select %p211, %s22, 1
        %p213 = scmp.lt.s32.totalorder %s210, 31
        %s214 = scalar_select %p213, %s210, 31
        %s215 = smul.addr %s212, 32
        %s216 = sadd.s32 %s214, %s215
        %s217 = smul.addr %s216, 8
        %s218 = scalar_lea.vmem %s3, %s217
        %s219 = smul.u32 2, %s23
        %s220 = smul.u32 32, %s23
        %p221 = scmp.lt.s32.totalorder %s22, 1
        %s222 = scalar_select %p221, %s22, 1
        %p223 = scmp.lt.s32.totalorder %s220, 31
        %s224 = scalar_select %p223, %s220, 31
        %s225 = smul.addr %s222, 32
        %s226 = sadd.s32 %s224, %s225
        %s227 = smul.addr %s226, 8
        %s228 = scalar_lea.vmem %s3, %s227
        %s229 = smul.u32 32, %s23
        %v231 = vld [vmem:[%s188] sm:$0xff]
        %v233 = vcombine.high %v231, %v231
        %v235 = vpack.c.bf16 %v231, %v231
        %v236 = vpack.c.bf16 %v233, %v233
        %v237 = vld [vmem:[#allocation4] sm:$0x3]
        %v238 = vld [vmem:[%s2] sm:$0x1]
        %v240 = vlaneseq
        %v241 = vshrl.u32 %v240, 7
        %v242 = vsub.s32 0, %v241
        %v243 = vrot.slane %v238, %v242
        %245 = vxpose.xlu0.c.b16.start [1/8] %v235, 128
        %246 = vxpose.xlu0.c.b16.cont [2/8] 0, 128
        %247 = vxpose.xlu0.c.b16.cont [3/8] 0, 128
        %248 = vxpose.xlu0.c.b16.cont [4/8] 0, 128
        %249 = vxpose.xlu0.c.b16.cont [5/8] 0, 128
        %250 = vxpose.xlu0.c.b16.cont [6/8] 0, 128
        %251 = vxpose.xlu0.c.b16.cont [7/8] 0, 128
        %252 = vxpose.xlu0.c.b16.end [8/8] 0, 128
        %v253 = vpop.trf.xlu0
        %v254 = vpop.trf.xlu0
        %v255 = vpop.trf.xlu0
        %v256 = vpop.trf.xlu0
        %v257 = vpop.trf.xlu0
        %v258 = vpop.trf.xlu0
        %v259 = vpop.trf.xlu0
        %v260 = vpop.trf.xlu0
        %261 = vxpose.xlu0.c.b16.start [1/8] %v236, 128
        %262 = vxpose.xlu0.c.b16.cont [2/8] 0, 128
        %263 = vxpose.xlu0.c.b16.cont [3/8] 0, 128
        %264 = vxpose.xlu0.c.b16.cont [4/8] 0, 128
        %265 = vxpose.xlu0.c.b16.cont [5/8] 0, 128
        %266 = vxpose.xlu0.c.b16.cont [6/8] 0, 128
        %267 = vxpose.xlu0.c.b16.cont [7/8] 0, 128
        %268 = vxpose.xlu0.c.b16.end [8/8] 0, 128
        %v269 = vpop.trf.xlu0
        %v270 = vpop.trf.xlu0
        %v271 = vpop.trf.xlu0
        %v272 = vpop.trf.xlu0
        %v273 = vpop.trf.xlu0
        %v274 = vpop.trf.xlu0
        %v275 = vpop.trf.xlu0
        %v276 = vpop.trf.xlu0
        %vm277 = vcmask 31744
        %v279 = vsel %vm277, %v253, 0
        %v282 = vsel %vm277, %v254, 0
        %v285 = vsel %vm277, %v255, 0
        %v288 = vsel %vm277, %v256, 0
        %v291 = vsel %vm277, %v257, 0
        %v294 = vsel %vm277, %v258, 0
        %v297 = vsel %vm277, %v259, 0
        %v300 = vsel %vm277, %v260, 0
        %v303 = vsel %vm277, %v269, 0
        %v306 = vsel %vm277, %v270, 0
        %v309 = vsel %vm277, %v271, 0
        %v312 = vsel %vm277, %v272, 0
        %v315 = vsel %vm277, %v273, 0
        %v318 = vsel %vm277, %v274, 0
        %v321 = vsel %vm277, %v275, 0
        %v324 = vsel %vm277, %v276, 0
        %vm326 = vcmask 1041408
        %v328 = vsel %vm326, %v237, 0
        %330 = vmatprep.subr.bf16.mxu0 0
        %331 = vmatpush1.bf16.msra.mxu0 0
        %332 = vmatprep.subr.bf16.mxu0 0
        %333 = vmatpush1.bf16.msra.mxu0 0
        %334 = vmatprep.subr.bf16.mxu0 0
        %335 = vmatpush1.bf16.msra.mxu0 0
        %336 = vmatprep.subr.bf16.mxu0 0
        %337 = vmatpush1.bf16.msra.mxu0 0
        %338 = vmatprep.subr.bf16.mxu0 0
        %339 = vmatpush1.bf16.msra.mxu0 0
        %340 = vmatprep.subr.bf16.mxu0 0
        %341 = vmatpush1.bf16.msra.mxu0 0
        %342 = vmatprep.subr.bf16.mxu0 0
        %343 = vmatpush1.bf16.msra.mxu0 0
        %344 = vmatprep.subr.bf16.mxu0 0
        %345 = vmatpush1.bf16.msra.mxu0 %v328
        %346 = vmatprep.subr.bf16.mxu0 0
        %347 = vmatpush2.bf16.msra.mxu0 0
        %348 = vmatprep.subr.bf16.mxu0 0
        %349 = vmatpush2.bf16.msra.mxu0 0
        %350 = vmatprep.subr.bf16.mxu0 0
        %351 = vmatpush2.bf16.msra.mxu0 0
        %352 = vmatprep.subr.bf16.mxu0 0
        %353 = vmatpush2.bf16.msra.mxu0 0
        %354 = vmatprep.subr.bf16.mxu0 0
        %355 = vmatpush2.bf16.msra.mxu0 0
        %356 = vmatprep.subr.bf16.mxu0 0
        %357 = vmatpush2.bf16.msra.mxu0 0
        %358 = vmatprep.subr.bf16.mxu0 0
        %359 = vmatpush2.bf16.msra.mxu0 0
        %360 = vmatprep.subr.bf16.mxu0 0
        %361 = vmatpush2.bf16.msra.mxu0 0
        %362 = vmatprep.mubr.bf16.mxu0 0
        %363 = vmatmul.mubr.bf16.gmra.mxu0 %v279
        %v364 = vpop.f32.mrf.mxu0
        %v365 = vadd.f32 %v243, %v364
        %v366 = vpop.f32.mrf.mxu0
        %v367 = vpop.f32.mrf.mxu0
        %v368 = vadd.f32 %v243, %v367
        %v369 = vpop.f32.mrf.mxu0
        %370 = vmatprep.mubr.bf16.mxu0 0
        %371 = vmatmul.mubr.bf16.gmra.mxu0 %v282
        %v372 = vpop.f32.mrf.mxu0
        %v373 = vadd.f32 %v243, %v372
        %v374 = vpop.f32.mrf.mxu0
        %v375 = vpop.f32.mrf.mxu0
        %v376 = vadd.f32 %v243, %v375
        %v377 = vpop.f32.mrf.mxu0
        %378 = vmatprep.mubr.bf16.mxu0 0
        %379 = vmatmul.mubr.bf16.gmra.mxu0 %v285
        %v380 = vpop.f32.mrf.mxu0
        %v381 = vadd.f32 %v243, %v380
        %v382 = vpop.f32.mrf.mxu0
        %v383 = vpop.f32.mrf.mxu0
        %v384 = vadd.f32 %v243, %v383
        %v385 = vpop.f32.mrf.mxu0
        %386 = vmatprep.mubr.bf16.mxu0 0
        %387 = vmatmul.mubr.bf16.gmra.mxu0 %v288
        %v388 = vpop.f32.mrf.mxu0
        %v389 = vadd.f32 %v243, %v388
        %v390 = vpop.f32.mrf.mxu0
        %v391 = vpop.f32.mrf.mxu0
        %v392 = vadd.f32 %v243, %v391
        %v393 = vpop.f32.mrf.mxu0
        %394 = vmatprep.mubr.bf16.mxu0 0
        %395 = vmatmul.mubr.bf16.gmra.mxu0 %v291
        %v396 = vpop.f32.mrf.mxu0
        %v397 = vadd.f32 %v243, %v396
        %v398 = vpop.f32.mrf.mxu0
        %v399 = vpop.f32.mrf.mxu0
        %v400 = vadd.f32 %v243, %v399
        %v401 = vpop.f32.mrf.mxu0
        %402 = vmatprep.mubr.bf16.mxu0 0
        %403 = vmatmul.mubr.bf16.gmra.mxu0 %v294
        %v404 = vpop.f32.mrf.mxu0
        %v405 = vadd.f32 %v243, %v404
        %v406 = vpop.f32.mrf.mxu0
        %v407 = vpop.f32.mrf.mxu0
        %v408 = vadd.f32 %v243, %v407
        %v409 = vpop.f32.mrf.mxu0
        %410 = vmatprep.mubr.bf16.mxu0 0
        %411 = vmatmul.mubr.bf16.gmra.mxu0 %v297
        %v412 = vpop.f32.mrf.mxu0
        %v413 = vadd.f32 %v243, %v412
        %v414 = vpop.f32.mrf.mxu0
        %v415 = vpop.f32.mrf.mxu0
        %v416 = vadd.f32 %v243, %v415
        %v417 = vpop.f32.mrf.mxu0
        %418 = vmatprep.mubr.bf16.mxu0 0
        %419 = vmatmul.mubr.bf16.gmra.mxu0 %v300
        %v420 = vpop.f32.mrf.mxu0
        %v421 = vadd.f32 %v243, %v420
        %v422 = vpop.f32.mrf.mxu0
        %v423 = vpop.f32.mrf.mxu0
        %v424 = vadd.f32 %v243, %v423
        %v425 = vpop.f32.mrf.mxu0
        %426 = vmatprep.mubr.bf16.mxu0 0
        %427 = vmatmul.mubr.bf16.gmra.mxu0 %v303
        %v428 = vpop.f32.mrf.mxu0
        %v429 = vadd.f32 %v243, %v428
        %v430 = vpop.f32.mrf.mxu0
        %v431 = vpop.f32.mrf.mxu0
        %v432 = vadd.f32 %v243, %v431
        %v433 = vpop.f32.mrf.mxu0
        %434 = vmatprep.mubr.bf16.mxu0 0
        %435 = vmatmul.mubr.bf16.gmra.mxu0 %v306
        %v436 = vpop.f32.mrf.mxu0
        %v437 = vadd.f32 %v243, %v436
        %v438 = vpop.f32.mrf.mxu0
        %v439 = vpop.f32.mrf.mxu0
        %v440 = vadd.f32 %v243, %v439
        %v441 = vpop.f32.mrf.mxu0
        %442 = vmatprep.mubr.bf16.mxu0 0
        %443 = vmatmul.mubr.bf16.gmra.mxu0 %v309
        %v444 = vpop.f32.mrf.mxu0
        %v445 = vadd.f32 %v243, %v444
        %v446 = vpop.f32.mrf.mxu0
        %v447 = vpop.f32.mrf.mxu0
        %v448 = vadd.f32 %v243, %v447
        %v449 = vpop.f32.mrf.mxu0
        %450 = vmatprep.mubr.bf16.mxu0 0
        %451 = vmatmul.mubr.bf16.gmra.mxu0 %v312
        %v452 = vpop.f32.mrf.mxu0
        %v453 = vadd.f32 %v243, %v452
        %v454 = vpop.f32.mrf.mxu0
        %v455 = vpop.f32.mrf.mxu0
        %v456 = vadd.f32 %v243, %v455
        %v457 = vpop.f32.mrf.mxu0
        %458 = vmatprep.mubr.bf16.mxu0 0
        %459 = vmatmul.mubr.bf16.gmra.mxu0 %v315
        %v460 = vpop.f32.mrf.mxu0
        %v461 = vadd.f32 %v243, %v460
        %v462 = vpop.f32.mrf.mxu0
        %v463 = vpop.f32.mrf.mxu0
        %v464 = vadd.f32 %v243, %v463
        %v465 = vpop.f32.mrf.mxu0
        %466 = vmatprep.mubr.bf16.mxu0 0
        %467 = vmatmul.mubr.bf16.gmra.mxu0 %v318
        %v468 = vpop.f32.mrf.mxu0
        %v469 = vadd.f32 %v243, %v468
        %v470 = vpop.f32.mrf.mxu0
        %v471 = vpop.f32.mrf.mxu0
        %v472 = vadd.f32 %v243, %v471
        %v473 = vpop.f32.mrf.mxu0
        %474 = vmatprep.mubr.bf16.mxu0 0
        %475 = vmatmul.mubr.bf16.gmra.mxu0 %v321
        %v476 = vpop.f32.mrf.mxu0
        %v477 = vadd.f32 %v243, %v476
        %v478 = vpop.f32.mrf.mxu0
        %v479 = vpop.f32.mrf.mxu0
        %v480 = vadd.f32 %v243, %v479
        %v481 = vpop.f32.mrf.mxu0
        %482 = vmatprep.mubr.bf16.mxu0 0
        %483 = vmatmul.mubr.bf16.gmra.mxu0 %v324
        %v484 = vpop.f32.mrf.mxu0
        %v485 = vadd.f32 %v243, %v484
        %v486 = vpop.f32.mrf.mxu0
        %v487 = vpop.f32.mrf.mxu0
        %v488 = vadd.f32 %v243, %v487
        %v489 = vpop.f32.mrf.mxu0
        %490 = vdwg.mxu0
        %vm491 = vcmask 261120
        %492 = vst.msk [vmem:[%s228] sm:$0xff] %vm491, %v365
        %493 = vst.msk [vmem:[%s228 + $0x8] sm:$0xff] %vm491, %v368
        %494 = vst.msk [vmem:[%s228 + $0x10] sm:$0xff] %vm491, %v373
        %495 = vst.msk [vmem:[%s228 + $0x18] sm:$0xff] %vm491, %v376
        %496 = vst.msk [vmem:[%s228 + $0x20] sm:$0xff] %vm491, %v381
        %497 = vst.msk [vmem:[%s228 + $0x28] sm:$0xff] %vm491, %v384
        %498 = vst.msk [vmem:[%s228 + $0x30] sm:$0xff] %vm491, %v389
        %499 = vst.msk [vmem:[%s228 + $0x38] sm:$0xff] %vm491, %v392
        %500 = vst.msk [vmem:[%s228 + $0x40] sm:$0xff] %vm491, %v397
        %501 = vst.msk [vmem:[%s228 + $0x48] sm:$0xff] %vm491, %v400
        %502 = vst.msk [vmem:[%s228 + $0x50] sm:$0xff] %vm491, %v405
        %503 = vst.msk [vmem:[%s228 + $0x58] sm:$0xff] %vm491, %v408
        %504 = vst.msk [vmem:[%s228 + $0x60] sm:$0xff] %vm491, %v413
        %505 = vst.msk [vmem:[%s228 + $0x68] sm:$0xff] %vm491, %v416
        %506 = vst.msk [vmem:[%s228 + $0x70] sm:$0xff] %vm491, %v421
        %507 = vst.msk [vmem:[%s228 + $0x78] sm:$0xff] %vm491, %v424
        %508 = vst.msk [vmem:[%s228 + $0x80] sm:$0xff] %vm491, %v429
        %509 = vst.msk [vmem:[%s228 + $0x88] sm:$0xff] %vm491, %v432
        %510 = vst.msk [vmem:[%s228 + $0x90] sm:$0xff] %vm491, %v437
        %511 = vst.msk [vmem:[%s228 + $0x98] sm:$0xff] %vm491, %v440
        %512 = vst.msk [vmem:[%s228 + $0xa0] sm:$0xff] %vm491, %v445
        %513 = vst.msk [vmem:[%s228 + $0xa8] sm:$0xff] %vm491, %v448
        %514 = vst.msk [vmem:[%s228 + $0xb0] sm:$0xff] %vm491, %v453
        %515 = vst.msk [vmem:[%s228 + $0xb8] sm:$0xff] %vm491, %v456
        %516 = vst.msk [vmem:[%s228 + $0xc0] sm:$0xff] %vm491, %v461
        %517 = vst.msk [vmem:[%s228 + $0xc8] sm:$0xff] %vm491, %v464
        %518 = vst.msk [vmem:[%s228 + $0xd0] sm:$0xff] %vm491, %v469
        %519 = vst.msk [vmem:[%s228 + $0xd8] sm:$0xff] %vm491, %v472
        %520 = vst.msk [vmem:[%s228 + $0xe0] sm:$0xff] %vm491, %v477
        %521 = vst.msk [vmem:[%s228 + $0xe8] sm:$0xff] %vm491, %v480
        %522 = vst.msk [vmem:[%s228 + $0xf0] sm:$0xff] %vm491, %v485
        %523 = vst.msk [vmem:[%s228 + $0xf8] sm:$0xff] %vm491, %v488
        %s524 = smul.u32 32, %s23
        %p525 = scmp.lt.s32.totalorder %s22, 1
        %s526 = scalar_select %p525, %s22, 1
        %p527 = scmp.lt.s32.totalorder %s524, 31
        %s528 = scalar_select %p527, %s524, 31
        %s529 = smul.addr %s526, 32
        %s530 = sadd.s32 %s528, %s529
        %s531 = smul.addr %s530, 8
        %s532 = scalar_lea.vmem %s3, %s531
        // Predicated region
        $region41: #{tpu_custom_call.1} parent=31 // pred_check
          %p533 = pneg %p120
        $region42: #{tpu_custom_call.1} parent=31 // pred_check_branch
          %535 = sbr.rel (%p533) target = $region44
        $region43: #{tpu_custom_call.1} parent=31 // pred_region
          %s536 = smul.u32 32, %s23
        $region44: #{tpu_custom_call.1} parent=31 // pred_fallthru
          _
      $region32: #{tpu_custom_call.1} parent=5 // pred_fallthru
        _
      %p537 = scmp.le.s32.totalorder 2, %s13
      // Predicated region
      $region45: #{tpu_custom_call.1} parent=5 // pred_check
        %p538 = pneg %p537
      $region46: #{tpu_custom_call.1} parent=5 // pred_check_branch
        %540 = sbr.rel (%p538) target = $region48
      $region47: #{tpu_custom_call.1} parent=5 // pred_region
        %s541 = ssub.s32 %s13, 2
        // Predicated region
        $region49: #{tpu_custom_call.1} parent=47 // pred_check
          %p542 = pneg %p126
        $region50: #{tpu_custom_call.1} parent=47 // pred_check_branch
          %544 = sbr.rel (%p542) target = $region52
        $region51: #{tpu_custom_call.1} parent=47 // pred_region
          %s545 = smul.u32 32, %s25
          %p546 = scmp.lt.s32.totalorder %s24, 1
          %s547 = scalar_select %p546, %s24, 1
          %p548 = scmp.lt.s32.totalorder %s545, 31
          %s549 = scalar_select %p548, %s545, 31
          %s550 = smul.addr %s547, 32
          %s551 = sadd.s32 %s549, %s550
          %s552 = smul.addr %s551, 8
          %s553 = scalar_lea.vmem %s3, %s552
        $region52: #{tpu_custom_call.1} parent=47 // pred_fallthru
          _
      $region48: #{tpu_custom_call.1} parent=5 // pred_fallthru
        _
    $region6: #{tpu_custom_call.1} parent=1 // loop_footer
      %s17 = sadd.s32 1, %s13
    $region7: #{tpu_custom_call.1} parent=1 // loop_footer_branch
      %12 = sbr.rel target = $region3
    $region8: #{tpu_custom_call.1} parent=1 // loop_exit
      _
    %554 = vsyncpa [#allocation3], 1
    %s555 = scalar_lea.sflag [#allocation3], 1
    %556 = vsyncpa %s555, 1
    %557 = vsyncpa [#allocation5], 1

</llo_original>
